<compile_context>
chip_gen: v6e
topology: v6e:2x2x1
jax: 0.10.0
libtpu: 0.0.40
codegen_flags: <defaults>
</compile_context>

<pallas_src>
import math

import jax
import jax.numpy as jnp
from jax.experimental import pallas as pl
from jax.experimental.pallas import tpu as pltpu

_LANE = 128
_SLAB_COLS = 16 * _LANE                  # 2048 lanes: lane-dense, unmasked vst
_TARGET_BLOCK_BYTES = 4 * 1024 * 1024    # ~4 MiB blocks amortize per-step overhead
_VMEM_LIMIT_BYTES = 48 * 1024 * 1024     # headroom on v7x (64 MiB phys), v5e/v6e (128 MiB)


def _copy_kernel(x_ref, o_ref):
    # Pure lane-dense copy of a (block_rows, cols) contiguous tile.
    o_ref[...] = x_ref[...]


def _copy_geometry(total, itemsize):
    """Pick a contiguous (rows, cols) slab layout + rows per block."""
    # Dtype-aware sublane packing unit: 8 for f32, 16 for bf16, 32 for int8/fp8.
    sub = 8 * max(1, 4 // itemsize)
    cols = _SLAB_COLS
    # Rows actually needed to hold `total` elements, rounded to the sublane unit.
    rows_needed = pl.cdiv(total, cols)
    rows_needed = pl.cdiv(rows_needed, sub) * sub
    # Rows per block: ~4 MiB, multiple of `sub`, but never more than needed
    # (avoids over-padding small inputs and VMEM blow-ups).
    target_elems = max(1, _TARGET_BLOCK_BYTES // itemsize)
    block_rows = max(sub, (target_elems // cols) // sub * sub)
    block_rows = min(block_rows, rows_needed)
    # Total slab rows: multiple of block_rows so the 1-D grid tiles exactly.
    rows = pl.cdiv(rows_needed, block_rows) * block_rows
    return rows, cols, block_rows


def _pallas_copy_flat(x_flat):
    """Explicit Pallas HBM->HBM copy of a flat contiguous buffer."""
    total = x_flat.shape[0]
    itemsize = jnp.dtype(x_flat.dtype).itemsize
    rows, cols, block_rows = _copy_geometry(total, itemsize)
    padded = rows * cols

    if padded != total:
        x_flat = jnp.pad(x_flat, (0, padded - total))
    slab = jnp.reshape(x_flat, (rows, cols))   # free: contiguous, metadata-only

    out = pl.pallas_call(
        _copy_kernel,
        out_shape=jax.ShapeDtypeStruct((rows, cols), slab.dtype),
        grid_spec=pltpu.PrefetchScalarGridSpec(
            num_scalar_prefetch=0,
            grid=(rows // block_rows,),
            in_specs=[pl.BlockSpec((block_rows, cols), lambda i: (i, 0))],
            out_specs=pl.BlockSpec((block_rows, cols), lambda i: (i, 0)),
        ),
        # Reuse the (donated) input buffer for the output: halves peak HBM
        # footprint; XLA copies the operand first if it is still live.
        input_output_aliases={0: 0},
        compiler_params=pltpu.CompilerParams(
            dimension_semantics=("parallel",),   # pure copy: steps independent
            vmem_limit_bytes=_VMEM_LIMIT_BYTES,
        ),
    )(slab)

    out_flat = jnp.reshape(out, (padded,))
    if padded != total:
        out_flat = out_flat[:total]
    return out_flat


def flatten_layer(x, *, fuse_copy=False):
    """Pallas equivalent of FlattenLayer.forward: x.view(N, -1).

    Default (`fuse_copy=False`): the flatten of a contiguous row-major array
    is metadata-only, so we return the free jnp.reshape and skip the kernel —
    this is the fastest possible implementation on every TPU generation.

    `fuse_copy=True`: run an explicit Pallas copy (useful only as a fusion /
    staging point inside a larger Pallas pipeline).
    """
    n = x.shape[0]
    flat = math.prod(x.shape[1:]) if x.ndim > 1 else 1
    x2d = jnp.reshape(x, (n, flat))
    if not fuse_copy:
        return x2d
    out_flat = _pallas_copy_flat(jnp.reshape(x, (n * flat,)))
    return jnp.reshape(out_flat, (n, flat))


if __name__ == "__main__":
    key = jax.random.PRNGKey(0)
    # Small NCHW input consistent with a conv-style feature map.
    x = jax.random.normal(key, (2, 4, 16, 16), dtype=jnp.float32)

    # Reference: torch x.view(N, -1) on contiguous NCHW == row-major reshape.
    ref = jnp.reshape(x, (x.shape[0], -1))

    # Default fast path (free, metadata-only — what .view actually is).
    out_fast = jax.block_until_ready(flatten_layer(x))
    assert out_fast.shape == ref.shape, (out_fast.shape, ref.shape)
    assert jnp.array_equal(out_fast, ref), "fast-path mismatch vs reference"

    # Explicit-copy path: exercises the Pallas kernel.
    out_kernel = jax.block_until_ready(flatten_layer(x, fuse_copy=True))
    assert out_kernel.shape == ref.shape, (out_kernel.shape, ref.shape)
    assert jnp.array_equal(out_kernel, ref), "kernel mismatch vs reference"

    print("KERNEL_OK")
</pallas_src>

<mosaic_0001>
module attributes {stable_mosaic.version = 11 : i64} {
  func.func @_copy_kernel(%arg0: i32, %arg1: memref<8x2048xf32, #tpu.memory_space<vmem>>, %arg2: memref<8x2048xf32, #tpu.memory_space<vmem>>) attributes {dimension_semantics = [#tpu.dimension_semantics<parallel>], iteration_bounds = array<i64: 1>, scalar_prefetch = 0 : i64, scratch_operands = 0 : i64, tpu.core_type = #tpu.core_type<tc>, window_params = [{transform_indices = @transform_0, window_bounds = array<i64: 8, 2048>}, {transform_indices = @transform_1, window_bounds = array<i64: 8, 2048>}]} {
    %c0 = arith.constant 0 : index
    %c0_0 = arith.constant 0 : index
    %0 = vector.load %arg1[%c0, %c0_0] : memref<8x2048xf32, #tpu.memory_space<vmem>>, vector<8x2048xf32>
    %c0_1 = arith.constant 0 : index
    %c0_2 = arith.constant 0 : index
    %1 = vector.load %arg2[%c0_1, %c0_2] : memref<8x2048xf32, #tpu.memory_space<vmem>>, vector<8x2048xf32>
    tpu.vector_store %arg2[%c0_1, %c0_2], %0 {strides = array<i32>} : memref<8x2048xf32, #tpu.memory_space<vmem>>, vector<8x2048xf32>,
    return
  }
  func.func @transform_0(%arg0: i32) -> (i32, i32) {
    %c0_i32 = arith.constant 0 : i32
    %c0_i32_0 = arith.constant 0 : i32
    return %arg0, %c0_i32 : i32, i32
  }
  func.func @transform_1(%arg0: i32) -> (i32, i32) {
    %c0_i32 = arith.constant 0 : i32
    %c0_i32_0 = arith.constant 0 : i32
    return %arg0, %c0_i32 : i32, i32
  }
}

</mosaic_0001>

<llo_original>
// kernel: tpu_custom_call.1
$region0: #{tpu_custom_call.1}
  #allocation0 [shape = 'u32[]', space=smem, size = 0x4, offset = 0x4, fixed_abs, tag = 'smem constant byte address 0x4 - core index']
  #allocation1 [shape = 'u32[144,128]{1,0:T(1,128)}', space=vmem, size = 0x12000, scoped, tag = 'internal scratch']
  %s0 = inlined_call_operand.hbm [shape: f32[8,2048], index: 0, kind: input, shape index: {}, may-alias: {0,1}]
  %s1 = inlined_call_operand.hbm [shape: f32[8,2048], index: 1, kind: output, shape index: {}, may-alias: {0,1}]
  %s2 = sld [smem:[#allocation0]]
  $region18: #{tpu_custom_call.1} parent=0
    _
  %s4 = ssub.s32 1, %s2
  %s5 = scalar_select 0, %s4, %s2
  $region1: #{tpu_custom_call.1} parent=0
    #allocation2 [shape = 'u8[65536]{0}', space=vmem, size = 0x10000, scoped, tag = 'input window, operand 0, single buffered']
    #allocation3 [shape = 's32[1]{0}', space=sflag, size = 0x4, scoped, tag = 'scoped memory for tpu_custom_call.1']
    #allocation4 [shape = 's32[1]{0}', space=sflag, size = 0x4, scoped, tag = 'scoped memory for tpu_custom_call.1']
    #allocation5 [shape = 'u8[65536]{0}', space=vmem, size = 0x10000, scoped, tag = 'output window, operand 0, single buffered']
    %6 = vsyncpa [#allocation3], 0
    %7 = vsyncpa [#allocation4], 0
    // Predicated region
    $region2: #{tpu_custom_call.1} parent=1 // pred_check
      _
    $region3: #{tpu_custom_call.1} parent=1 // pred_check_branch
      %9 = sbr.rel (0) target = $region5
    $region4: #{tpu_custom_call.1} parent=1 // pred_region
      %s11 = ssub.s32 2048, 2048
      %12 = vsyncadd [#allocation3], %s11
      %s14 = sshll.u32 [#allocation2], 4
      %s15 = int_to_ptr.vmem [resolvable:$true] %s14
      %17 = dma.hbm_to_vmem [thread:$0]  %s0, 2048, %s15, [#allocation3]
    $region5: #{tpu_custom_call.1} parent=1 // pred_fallthru
      _
    // Predicated region
    $region6: #{tpu_custom_call.1} parent=1 // pred_check
      _
    $region7: #{tpu_custom_call.1} parent=1 // pred_check_branch
      %19 = sbr.rel (0) target = $region9
    $region8: #{tpu_custom_call.1} parent=1 // pred_region
      %20 = dma.done [#allocation3], 2048
    $region9: #{tpu_custom_call.1} parent=1 // pred_fallthru
      _
    %v21 = vld [vmem:[#allocation2] sm:$0xff]
    %v22 = vld [vmem:[#allocation2 + $0x8] sm:$0xff]
    %v23 = vld [vmem:[#allocation2 + $0x10] sm:$0xff]
    %v24 = vld [vmem:[#allocation2 + $0x18] sm:$0xff]
    %v25 = vld [vmem:[#allocation2 + $0x20] sm:$0xff]
    %v26 = vld [vmem:[#allocation2 + $0x28] sm:$0xff]
    %v27 = vld [vmem:[#allocation2 + $0x30] sm:$0xff]
    %v28 = vld [vmem:[#allocation2 + $0x38] sm:$0xff]
    %v29 = vld [vmem:[#allocation2 + $0x40] sm:$0xff]
    %v30 = vld [vmem:[#allocation2 + $0x48] sm:$0xff]
    %v31 = vld [vmem:[#allocation2 + $0x50] sm:$0xff]
    %v32 = vld [vmem:[#allocation2 + $0x58] sm:$0xff]
    %v33 = vld [vmem:[#allocation2 + $0x60] sm:$0xff]
    %v34 = vld [vmem:[#allocation2 + $0x68] sm:$0xff]
    %v35 = vld [vmem:[#allocation2 + $0x70] sm:$0xff]
    %v36 = vld [vmem:[#allocation2 + $0x78] sm:$0xff]
    %37 = vst [vmem:[#allocation5] sm:$0xff] %v21
    %38 = vst [vmem:[#allocation5 + $0x8] sm:$0xff] %v22
    %39 = vst [vmem:[#allocation5 + $0x10] sm:$0xff] %v23
    %40 = vst [vmem:[#allocation5 + $0x18] sm:$0xff] %v24
    %41 = vst [vmem:[#allocation5 + $0x20] sm:$0xff] %v25
    %42 = vst [vmem:[#allocation5 + $0x28] sm:$0xff] %v26
    %43 = vst [vmem:[#allocation5 + $0x30] sm:$0xff] %v27
    %44 = vst [vmem:[#allocation5 + $0x38] sm:$0xff] %v28
    %45 = vst [vmem:[#allocation5 + $0x40] sm:$0xff] %v29
    %46 = vst [vmem:[#allocation5 + $0x48] sm:$0xff] %v30
    %47 = vst [vmem:[#allocation5 + $0x50] sm:$0xff] %v31
    %48 = vst [vmem:[#allocation5 + $0x58] sm:$0xff] %v32
    %49 = vst [vmem:[#allocation5 + $0x60] sm:$0xff] %v33
    %50 = vst [vmem:[#allocation5 + $0x68] sm:$0xff] %v34
    %51 = vst [vmem:[#allocation5 + $0x70] sm:$0xff] %v35
    %52 = vst [vmem:[#allocation5 + $0x78] sm:$0xff] %v36
    // Predicated region
    $region10: #{tpu_custom_call.1} parent=1 // pred_check
      _
    $region11: #{tpu_custom_call.1} parent=1 // pred_check_branch
      %54 = sbr.rel (0) target = $region13
    $region12: #{tpu_custom_call.1} parent=1 // pred_region
      %s56 = ssub.s32 2048, 2048
      %57 = vsyncadd [#allocation4], %s56
      %s59 = sshll.u32 [#allocation5], 4
      %s60 = int_to_ptr.vmem [resolvable:$true] %s59
      %62 = dma.vmem_to_hbm [thread:$0]  %s60, 2048, %s1, [#allocation4]
    $region13: #{tpu_custom_call.1} parent=1 // pred_fallthru
      _
    // Predicated region
    $region14: #{tpu_custom_call.1} parent=1 // pred_check
      _
    $region15: #{tpu_custom_call.1} parent=1 // pred_check_branch
      %64 = sbr.rel (0) target = $region17
    $region16: #{tpu_custom_call.1} parent=1 // pred_region
      %65 = dma.done [#allocation4], 2048
    $region17: #{tpu_custom_call.1} parent=1 // pred_fallthru
      _
    %66 = vsyncpa [#allocation3], 1
    %67 = vsyncpa [#allocation4], 1

</llo_original>
